<compile_context>
chip_gen: v6e
topology: v6e:2x2x1
jax: 0.10.0
libtpu: 0.0.40
codegen_flags: <defaults>
</compile_context>

<pallas_src>
import functools

import jax
import jax.numpy as jnp
from jax import lax
from jax.experimental import pallas as pl
from jax.experimental.pallas import tpu as pltpu


# ------------------------------ tiled linear --------------------------------

def _linear_kernel(x_ref, w_ref, b_ref, o_ref, *, relu):
    y = jnp.dot(x_ref[...], w_ref[...], preferred_element_type=jnp.float32)
    y = y + b_ref[...]
    if relu:
        y = jnp.maximum(y, 0.0)
    o_ref[...] = y.astype(o_ref.dtype)


def pallas_linear(x, w, b, *, relu=False, out_dtype=jnp.float32, tm=128, tn=128):
    """y = x @ w + b (optional ReLU). x:[M,K] (bf16), w:[K,N] (bf16), b:[N] (f32).

    Tiled over (M, N) with the K dimension resident; both grid axes parallel.
    """
    M, K = x.shape
    N = w.shape[1]
    tm = min(tm, M)
    if M % tm:
        tm = M
    tn = min(tn, N)
    if N % tn:
        tn = N
    grid = (M // tm, N // tn)
    return pl.pallas_call(
        functools.partial(_linear_kernel, relu=relu),
        out_shape=jax.ShapeDtypeStruct((M, N), out_dtype),
        grid_spec=pltpu.PrefetchScalarGridSpec(
            num_scalar_prefetch=0,
            grid=grid,
            in_specs=[
                pl.BlockSpec((tm, K), lambda i, j: (i, 0)),
                pl.BlockSpec((K, tn), lambda i, j: (0, j)),
                pl.BlockSpec((1, tn), lambda i, j: (0, j)),
            ],
            out_specs=pl.BlockSpec((tm, tn), lambda i, j: (i, j)),
        ),
        compiler_params=pltpu.CompilerParams(
            dimension_semantics=("parallel", "parallel")),
    )(x, w, b.reshape(1, N))


# ------------------------- LSTM recurrence kernel ----------------------------

def _lstm_kernel(gx_ref, whh_ref, len_ref, h0_ref, y_ref, hn_ref, cn_ref,
                 *, tt, hidden):
    """One LSTM layer, one (batch block, time block) grid step.

    gx_ref : (tt, bb, 4H) f32  precomputed x @ W_ih + (b_ih + b_hh)
    whh_ref: (H, 4H)      bf16 recurrent weight (resident; constant index map)
    len_ref: (bb, 1)      int32 sequence lengths for this batch block
    h0_ref : (bb, H)      f32  initial hidden (== initial cell) state
    y_ref  : (tt, bb, H)  bf16 per-timestep outputs (zeroed past length)
    hn_ref/cn_ref: (bb, H) f32 carried state, resident across the time grid axis.
    """
    tb = pl.program_id(1)

    @pl.when(tb == 0)
    def _():
        hn_ref[...] = h0_ref[...]
        cn_ref[...] = h0_ref[...]

    lens = len_ref[...]            # (bb, 1) int32
    whh = whh_ref[...]             # (H, 4H) bf16

    def step(i, carry):
        h, c = carry               # (bb, H) f32
        t_global = tb * tt + i
        gates = (jnp.dot(h.astype(jnp.bfloat16), whh,
                         preferred_element_type=jnp.float32)
                 + gx_ref[i])      # (bb, 4H) f32, PyTorch gate order i, f, g, o
        i_g = jax.nn.sigmoid(gates[:, 0 * hidden:1 * hidden])
        f_g = jax.nn.sigmoid(gates[:, 1 * hidden:2 * hidden])
        g_g = jnp.tanh(gates[:, 2 * hidden:3 * hidden])
        o_g = jax.nn.sigmoid(gates[:, 3 * hidden:4 * hidden])

        c_new = f_g * c + i_g * g_g
        h_new = o_g * jnp.tanh(c_new)

        valid = t_global < lens                      # (bb, 1) bool
        h = jnp.where(valid, h_new, h)               # freeze state past length
        c = jnp.where(valid, c_new, c)
        y_ref[i] = jnp.where(valid, h_new, 0.0).astype(y_ref.dtype)
        return (h, c)

    h, c = lax.fori_loop(0, tt, step, (hn_ref[...], cn_ref[...]), unroll=True)
    hn_ref[...] = h
    cn_ref[...] = c


def pallas_lstm_layer(gx_tm, lengths_col, whh, h0, *, tt, bb):
    """gx_tm:[T,B,4H] f32, lengths_col:[B,1] i32, whh:[H,4H] bf16, h0:[B,H] f32."""
    T, B, G = gx_tm.shape
    H = whh.shape[0]
    assert G == 4 * H
    assert T % tt == 0 and B % bb == 0
    grid = (B // bb, T // tt)

    grid_spec = pltpu.PrefetchScalarGridSpec(
        num_scalar_prefetch=0,
        grid=grid,
        in_specs=[
            pl.BlockSpec((tt, bb, G), lambda b, t: (t, b, 0)),   # gates_x slab
            pl.BlockSpec((H, G), lambda b, t: (0, 0)),           # W_hh (resident)
            pl.BlockSpec((bb, 1), lambda b, t: (b, 0)),          # lengths
            pl.BlockSpec((bb, H), lambda b, t: (b, 0)),          # h0 (== c0)
        ],
        out_specs=[
            pl.BlockSpec((tt, bb, H), lambda b, t: (t, b, 0)),   # y (bf16)
            pl.BlockSpec((bb, H), lambda b, t: (b, 0)),          # h_n accumulator
            pl.BlockSpec((bb, H), lambda b, t: (b, 0)),          # c_n accumulator
        ],
    )
    y, hn, cn = pl.pallas_call(
        functools.partial(_lstm_kernel, tt=tt, hidden=H),
        out_shape=(
            jax.ShapeDtypeStruct((T, B, H), jnp.bfloat16),
            jax.ShapeDtypeStruct((B, H), jnp.float32),
            jax.ShapeDtypeStruct((B, H), jnp.float32),
        ),
        grid_spec=grid_spec,
        compiler_params=pltpu.CompilerParams(
            dimension_semantics=("parallel", "arbitrary")),
    )(gx_tm, whh, lengths_col, h0)
    return y, hn, cn


# --------------------------- parameters & forward ----------------------------

def init_params(key, vocab, emb_dim, hidden, num_layers, latent):
    ks = list(jax.random.split(key, 5 + 3 * num_layers))
    s = 0.1
    params = {
        # MXU-fed weights stored in bf16; biases / state stay f32.
        "embedding": (jax.random.normal(ks[0], (vocab, emb_dim), jnp.float32)
                      * s).astype(jnp.bfloat16),
        "w_l2h": (jax.random.normal(ks[1], (latent, hidden), jnp.float32)
                  * s).astype(jnp.bfloat16),
        "b_l2h": jax.random.normal(ks[2], (hidden,), jnp.float32) * s,
        "w_out": (jax.random.normal(ks[3], (hidden, vocab), jnp.float32)
                  * s).astype(jnp.bfloat16),
        "b_out": jax.random.normal(ks[4], (vocab,), jnp.float32) * s,
        "lstm": [],
    }
    for l in range(num_layers):
        in_dim = emb_dim if l == 0 else hidden
        params["lstm"].append({
            # stored pre-transposed vs. PyTorch; bias is (b_ih + b_hh) combined
            "wih": (jax.random.normal(ks[5 + 3 * l], (in_dim, 4 * hidden), jnp.float32)
                    * s).astype(jnp.bfloat16),
            "whh": (jax.random.normal(ks[6 + 3 * l], (hidden, 4 * hidden), jnp.float32)
                    * s).astype(jnp.bfloat16),
            "b": jax.random.normal(ks[7 + 3 * l], (4 * hidden,), jnp.float32) * s,
        })
    return params


def decoder_forward(params, x_tokens, lengths, latent_states):
    """Mirrors Decoder.forward(x, lengths, states, is_latent_states=True)."""
    B, T = x_tokens.shape
    H = params["w_l2h"].shape[1]

    # h0 = c0 = relu(latent2hidden(states)), repeated for every layer.
    h0 = pallas_linear(latent_states.astype(jnp.bfloat16),
                       params["w_l2h"], params["b_l2h"], relu=True)   # [B, H] f32

    # embedding lookup (gather) — glue in plain JAX
    emb = params["embedding"][x_tokens]                               # [B, T, E] bf16
    x_tm = jnp.transpose(emb, (1, 0, 2))                              # [T, B, E] bf16

    # pack_padded_sequence -> lengths drive an in-kernel validity mask
    lengths_col = lengths.astype(jnp.int32).reshape(B, 1)

    tt = min(8, T)
    hns, cns = [], []
    # TODO(synk): inter-layer dropout is train-mode-only in nn.LSTM; eval semantics here.
    for lp in params["lstm"]:
        e_in = x_tm.shape[-1]
        # Hoisted input projection: one big MXU matmul per layer.
        gx = pallas_linear(x_tm.reshape(T * B, e_in), lp["wih"], lp["b"])
        gx = gx.reshape(T, B, 4 * H)                                  # f32
        x_tm, hn, cn = pallas_lstm_layer(gx, lengths_col, lp["whh"], h0, tt=tt, bb=B)
        hns.append(hn)
        cns.append(cn)
    h_n = jnp.stack(hns)                                              # [L, B, H]
    c_n = jnp.stack(cns)

    # pad_packed_sequence output (zero-padded) -> output linear on every position
    y_bt = jnp.transpose(x_tm, (1, 0, 2)).reshape(B * T, H)           # bf16
    V = params["w_out"].shape[1]
    logits = pallas_linear(y_bt, params["w_out"], params["b_out"]).reshape(B, T, V)
    return logits, lengths, (h_n, c_n)


# ----------------------------------- main ------------------------------------

if __name__ == "__main__":
    B, T = 8, 16
    VOCAB, EMB, HIDDEN, LATENT, NUM_LAYERS = 256, 32, 128, 32, 2

    key = jax.random.PRNGKey(0)
    kp, kx, kz = jax.random.split(key, 3)

    params = init_params(kp, VOCAB, EMB, HIDDEN, NUM_LAYERS, LATENT)
    x_tokens = jax.random.randint(kx, (B, T), 0, VOCAB, dtype=jnp.int32)
    lengths = jnp.array([16, 14, 12, 10, 8, 6, 4, 2], dtype=jnp.int32)  # sorted desc
    latent_states = jax.random.normal(kz, (B, LATENT), jnp.float32)

    logits, out_lengths, (h_n, c_n) = decoder_forward(params, x_tokens, lengths,
                                                      latent_states)
    jax.block_until_ready((logits, out_lengths, h_n, c_n))

    assert logits.shape == (B, T, VOCAB)
    assert h_n.shape == (NUM_LAYERS, B, HIDDEN)
    assert c_n.shape == (NUM_LAYERS, B, HIDDEN)
    print("KERNEL_OK")
</pallas_src>

<mosaic_0001>
module attributes {stable_mosaic.version = 11 : i64} {
  func.func @_linear_kernel(%arg0: i32, %arg1: i32, %arg2: memref<8x32xbf16, #tpu.memory_space<vmem>>, %arg3: memref<32x128xbf16, #tpu.memory_space<vmem>>, %arg4: memref<1x128xf32, #tpu.memory_space<vmem>>, %arg5: memref<8x128xf32, #tpu.memory_space<vmem>>) attributes {dimension_semantics = [#tpu.dimension_semantics<parallel>, #tpu.dimension_semantics<parallel>], iteration_bounds = array<i64: 1, 1>, scalar_prefetch = 0 : i64, scratch_operands = 0 : i64, tpu.core_type = #tpu.core_type<tc>, window_params = [{transform_indices = @transform_0, window_bounds = array<i64: 8, 32>}, {transform_indices = @transform_1, window_bounds = array<i64: 32, 128>}, {transform_indices = @transform_2, window_bounds = array<i64: 1, 128>}, {transform_indices = @transform_3, window_bounds = array<i64: 8, 128>}]} {
    %c0 = arith.constant 0 : index
    %c0_0 = arith.constant 0 : index
    %0 = vector.load %arg2[%c0, %c0_0] : memref<8x32xbf16, #tpu.memory_space<vmem>>, vector<8x32xbf16>
    %c0_1 = arith.constant 0 : index
    %c0_2 = arith.constant 0 : index
    %1 = vector.load %arg3[%c0_1, %c0_2] : memref<32x128xbf16, #tpu.memory_space<vmem>>, vector<32x128xbf16>
    %cst = arith.constant dense<0.000000e+00> : vector<8x128xf32>
    %2 = tpu.matmul %0, %1, %cst {dimension_numbers = #tpu.dot_dimension_numbers<[1], [0], [0], [1], [0, 0, 1, 1], [], []>} : vector<8x32xbf16>, vector<32x128xbf16>, vector<8x128xf32> -> vector<8x128xf32>
    %c0_3 = arith.constant 0 : index
    %c0_4 = arith.constant 0 : index
    %3 = vector.load %arg4[%c0_3, %c0_4] : memref<1x128xf32, #tpu.memory_space<vmem>>, vector<1x128xf32>
    %4 = vector.broadcast %3 : vector<1x128xf32> to vector<8x128xf32>
    %5 = arith.addf %2, %4 : vector<8x128xf32>
    %cst_5 = arith.constant 0.000000e+00 : f32
    %6 = vector.broadcast %cst_5 : f32 to vector<8x128xf32>
    %7 = arith.maximumf %5, %6 : vector<8x128xf32>
    %c0_6 = arith.constant 0 : index
    %c0_7 = arith.constant 0 : index
    %8 = vector.load %arg5[%c0_6, %c0_7] : memref<8x128xf32, #tpu.memory_space<vmem>>, vector<8x128xf32>
    tpu.vector_store %arg5[%c0_6, %c0_7], %7 {strides = array<i32>} : memref<8x128xf32, #tpu.memory_space<vmem>>, vector<8x128xf32>,
    return
  }
  func.func @transform_0(%arg0: i32, %arg1: i32) -> (i32, i32) {
    %c0_i32 = arith.constant 0 : i32
    %c0_i32_0 = arith.constant 0 : i32
    return %arg0, %c0_i32 : i32, i32
  }
  func.func @transform_1(%arg0: i32, %arg1: i32) -> (i32, i32) {
    %c0_i32 = arith.constant 0 : i32
    %c0_i32_0 = arith.constant 0 : i32
    return %c0_i32, %arg1 : i32, i32
  }
  func.func @transform_2(%arg0: i32, %arg1: i32) -> (i32, i32) {
    %c0_i32 = arith.constant 0 : i32
    %c0_i32_0 = arith.constant 0 : i32
    return %c0_i32, %arg1 : i32, i32
  }
  func.func @transform_3(%arg0: i32, %arg1: i32) -> (i32, i32) {
    %c0_i32 = arith.constant 0 : i32
    return %arg0, %arg1 : i32, i32
  }
}

</mosaic_0001>

<llo_original>
// kernel: tpu_custom_call.1
$region0: #{tpu_custom_call.1}
  #allocation0 [shape = 'u32[]', space=smem, size = 0x4, offset = 0x4, fixed_abs, tag = 'smem constant byte address 0x4 - core index']
  #allocation1 [shape = 'u32[144,128]{1,0:T(1,128)}', space=vmem, size = 0x12000, scoped, tag = 'internal scratch']
  %s0 = inlined_call_operand.hbm [shape: bf16[8,32], index: 0, kind: input, shape index: {}]
  %s1 = inlined_call_operand.hbm [shape: bf16[32,128], index: 1, kind: input, shape index: {}]
  %s2 = inlined_call_operand.vmem [shape: f32[1,128], index: 2, kind: input, shape index: {}]
  %s3 = inlined_call_operand.hbm [shape: f32[8,128], index: 3, kind: output, shape index: {}]
  %s4 = sld [smem:[#allocation0]]
  $region30: #{tpu_custom_call.1} parent=0
    _
  %s6 = ssub.s32 1, %s4
  %s7 = scalar_select 0, %s6, %s4
  $region1: #{tpu_custom_call.1} parent=0
    #allocation2 [shape = 'u8[2048]{0}', space=vmem, size = 0x800, scoped, tag = 'input window, operand 0, single buffered']
    #allocation3 [shape = 's32[1]{0}', space=sflag, size = 0x4, scoped, tag = 'scoped memory for tpu_custom_call.1']
    #allocation4 [shape = 's32[1]{0}', space=sflag, size = 0x4, scoped, tag = 'scoped memory for tpu_custom_call.1']
    #allocation5 [shape = 'u8[8192]{0}', space=vmem, size = 0x2000, scoped, tag = 'input window, operand 1, single buffered']
    #allocation6 [shape = 's32[1]{0}', space=sflag, size = 0x4, scoped, tag = 'scoped memory for tpu_custom_call.1']
    #allocation7 [shape = 'u8[4096]{0}', space=vmem, size = 0x1000, scoped, tag = 'output window, operand 0, single buffered']
    %8 = vsyncpa [#allocation3], 0
    %9 = vsyncpa [#allocation6], 0
    %10 = vsyncpa [#allocation4], 0
    // Predicated region
    $region2: #{tpu_custom_call.1} parent=1 // pred_check
      _
    $region3: #{tpu_custom_call.1} parent=1 // pred_check_branch
      %12 = sbr.rel (0) target = $region5
    $region4: #{tpu_custom_call.1} parent=1 // pred_region
      %s14 = ssub.s32 64, 64
      %15 = vsyncadd [#allocation3], %s14
      %s17 = sshll.u32 [#allocation2], 4
      %s18 = int_to_ptr.vmem [resolvable:$true] %s17
      %20 = dma.hbm_to_vmem [thread:$0]  %s0, 64, %s18, [#allocation3]
    $region5: #{tpu_custom_call.1} parent=1 // pred_fallthru
      _
    // Predicated region
    $region6: #{tpu_custom_call.1} parent=1 // pred_check
      _
    $region7: #{tpu_custom_call.1} parent=1 // pred_check_branch
      %22 = sbr.rel (0) target = $region9
    $region8: #{tpu_custom_call.1} parent=1 // pred_region
      %s24 = ssub.s32 256, 256
      %25 = vsyncadd [#allocation6], %s24
      %s26 = sshll.u32 [#allocation5], 4
      %s27 = int_to_ptr.vmem [resolvable:$true] %s26
      %32 = dma.hbm_to_vmem [thread:$0]  %s1, 256, %s27, [#allocation6], 64, 64, 4
    $region9: #{tpu_custom_call.1} parent=1 // pred_fallthru
      _
    // Predicated region
    $region10: #{tpu_custom_call.1} parent=1 // pred_check
      _
    $region11: #{tpu_custom_call.1} parent=1 // pred_check_branch
      %34 = sbr.rel (0) target = $region13
    $region12: #{tpu_custom_call.1} parent=1 // pred_region
      _
    $region13: #{tpu_custom_call.1} parent=1 // pred_fallthru
      _
    // Predicated region
    $region14: #{tpu_custom_call.1} parent=1 // pred_check
      _
    $region15: #{tpu_custom_call.1} parent=1 // pred_check_branch
      %36 = sbr.rel (0) target = $region17
    $region16: #{tpu_custom_call.1} parent=1 // pred_region
      %37 = dma.done [#allocation3], 64
    $region17: #{tpu_custom_call.1} parent=1 // pred_fallthru
      _
    // Predicated region
    $region18: #{tpu_custom_call.1} parent=1 // pred_check
      _
    $region19: #{tpu_custom_call.1} parent=1 // pred_check_branch
      %39 = sbr.rel (0) target = $region21
    $region20: #{tpu_custom_call.1} parent=1 // pred_region
      %40 = dma.done [#allocation6], 256
    $region21: #{tpu_custom_call.1} parent=1 // pred_fallthru
      _
    %v42 = vld [vmem:[#allocation2] sm:$0xf]
    %v43 = vld [vmem:[#allocation5] sm:$0xf]
    %v44 = vld [vmem:[#allocation5 + $0x4] sm:$0xf]
    %v45 = vld [vmem:[#allocation5 + $0x8] sm:$0xf]
    %v46 = vld [vmem:[#allocation5 + $0xc] sm:$0xf]
    %v47 = vld [vmem:[%s2] sm:$0x1]
    %v49 = vlaneseq
    %v50 = vshrl.u32 %v49, 7
    %v51 = vsub.s32 0, %v50
    %v52 = vrot.slane %v47, %v51
    %v58 = vunpack.c.l.b16 %v43
    %v59 = vunpack.c.l.b16 %v44
    %v60 = vunpack.c.l.b16 %v45
    %v61 = vunpack.c.l.b16 %v46
    %v62 = vpack.c.b16 %v59, %v58
    %v63 = vpack.c.b16 %v61, %v60
    %vm66 = vcmask 261120
    %v68 = vsel %vm66, %v42, 0
    %70 = vmatprep.subr.bf16.mxu0 0
    %71 = vmatpush1.bf16.msra.mxu0 0
    %72 = vmatprep.subr.bf16.mxu0 0
    %73 = vmatpush1.bf16.msra.mxu0 0
    %74 = vmatprep.subr.bf16.mxu0 0
    %75 = vmatpush1.bf16.msra.mxu0 0
    %76 = vmatprep.subr.bf16.mxu0 0
    %77 = vmatpush1.bf16.msra.mxu0 0
    %78 = vmatprep.subr.bf16.mxu0 0
    %79 = vmatpush1.bf16.msra.mxu0 0
    %80 = vmatprep.subr.bf16.mxu0 0
    %81 = vmatpush1.bf16.msra.mxu0 0
    %82 = vmatprep.subr.bf16.mxu0 0
    %83 = vmatpush1.bf16.msra.mxu0 %v63
    %84 = vmatprep.subr.bf16.mxu0 0
    %85 = vmatpush1.bf16.msra.mxu0 %v62
    %86 = vmatprep.subr.bf16.mxu0 0
    %87 = vmatpush2.bf16.msra.mxu0 0
    %88 = vmatprep.subr.bf16.mxu0 0
    %89 = vmatpush2.bf16.msra.mxu0 0
    %90 = vmatprep.subr.bf16.mxu0 0
    %91 = vmatpush2.bf16.msra.mxu0 0
    %92 = vmatprep.subr.bf16.mxu0 0
    %93 = vmatpush2.bf16.msra.mxu0 0
    %94 = vmatprep.subr.bf16.mxu0 0
    %95 = vmatpush2.bf16.msra.mxu0 0
    %96 = vmatprep.subr.bf16.mxu0 0
    %97 = vmatpush2.bf16.msra.mxu0 0
    %98 = vmatprep.subr.bf16.mxu0 0
    %99 = vmatpush2.bf16.msra.mxu0 0
    %100 = vmatprep.subr.bf16.mxu0 0
    %101 = vmatpush2.bf16.msra.mxu0 0
    %102 = vmatprep.mubr.bf16.mxu0 0
    %103 = vmatmul.mubr.bf16.gmra.mxu0 %v68
    %v104 = vpop.f32.mrf.mxu0
    %v105 = vadd.f32 %v52, %v104
    %v106 = vpop.f32.mrf.mxu0
    %v107 = vpop.f32.mrf.mxu0
    %v108 = vpop.f32.mrf.mxu0
    %109 = vdwg.mxu0
    %v110 = vmax.f32 %v105, 0.0
    %111 = vst [vmem:[#allocation7] sm:$0xff] %v110
    // Predicated region
    $region22: #{tpu_custom_call.1} parent=1 // pred_check
      _
    $region23: #{tpu_custom_call.1} parent=1 // pred_check_branch
      %113 = sbr.rel (0) target = $region25
    $region24: #{tpu_custom_call.1} parent=1 // pred_region
      %s115 = ssub.s32 128, 128
      %116 = vsyncadd [#allocation4], %s115
      %s118 = sshll.u32 [#allocation7], 4
      %s119 = int_to_ptr.vmem [resolvable:$true] %s118
      %121 = dma.vmem_to_hbm [thread:$0]  %s119, 128, %s3, [#allocation4]
    $region25: #{tpu_custom_call.1} parent=1 // pred_fallthru
      _
    // Predicated region
    $region26: #{tpu_custom_call.1} parent=1 // pred_check
      _
    $region27: #{tpu_custom_call.1} parent=1 // pred_check_branch
      %123 = sbr.rel (0) target = $region29
    $region28: #{tpu_custom_call.1} parent=1 // pred_region
      %124 = dma.done [#allocation4], 128
    $region29: #{tpu_custom_call.1} parent=1 // pred_fallthru
      _
    %125 = vsyncpa [#allocation3], 1
    %126 = vsyncpa [#allocation6], 1
    %127 = vsyncpa [#allocation4], 1

</llo_original>
